<compile_context>
chip_gen: v5e
topology: v5e:2x2
jax: 0.10.0
libtpu: 0.0.40
codegen_flags: <defaults>
</compile_context>

<pallas_src>
import functools

import jax
import jax.numpy as jnp
from jax.experimental import pallas as pl
from jax.experimental.pallas import tpu as pltpu


def _round_up(v, m):
    return (v + m - 1) // m * m


# --------------------------- kernel A: feature transform ---------------------------
def _linear_kernel(x_ref, w_ref, xw_ref, s_ref, *, hc):
    """One wide matmul: [x @ W_all | x @ [Wa_src|Wa_dst|0...]] -> (xw, s)."""
    res = jnp.dot(x_ref[...], w_ref[...],
                  preferred_element_type=jnp.float32)        # [TM, HC+128] f32
    xw_ref[...] = res[:, :hc].astype(xw_ref.dtype)           # bf16, lane-dense
    s_ref[...] = res[:, hc:]                                 # f32, lane-dense 128


# --------------------------- kernel B: attention + aggregate ------------------------
def _gat_attn_kernel(xw_ref, s_ref, asrc_ref, adj_ref, out_ref, *, heads, c):
    """One row tile of dense-adjacency GAT attention, all heads fused."""
    # Additive mask 0 / -1e30, built ONCE per tile from the int8 adjacency
    # and reused by every head.
    neg = (adj_ref[...].astype(jnp.float32) - 1.0) * jnp.float32(1e30)  # [TM, N]

    s = s_ref[...]                                           # [TM, 128] f32
    asrc = asrc_ref[...]                                     # [H, N]    f32

    for h in range(heads):                                   # static loop (fused heads)
        a_dst = s[:, heads + h:heads + h + 1]                # [TM, 1]
        a_src = asrc[h:h + 1, :]                             # [1, N]

        raw = a_dst + a_src                                  # [TM, N]
        leaky = jnp.maximum(raw, 0.2 * raw)                  # LeakyReLU(0.2)
        logits = leaky + neg

        m = jnp.max(logits, axis=-1, keepdims=True)          # finite (self loops)
        e = jnp.exp(logits - m)                              # masked entries -> 0
        denom = jnp.sum(e, axis=-1, keepdims=True)           # f32 denominator

        # Aggregate first (bf16 MXU, f32 accumulate), normalise after.
        o = jnp.dot(e.astype(jnp.bfloat16), xw_ref[:, h * c:(h + 1) * c],
                    preferred_element_type=jnp.float32)      # [TM, C]
        out_ref[:, h * c:(h + 1) * c] = (
            o * pl.reciprocal(denom, approx=True)).astype(out_ref.dtype)


# ----------------------------------- layer wrapper ----------------------------------
def gat_conv(x_pad, w, att_src, att_dst, bias, adj, *, concat, tm):
    """One GATConv layer on padded inputs.

    x_pad:    [N_pad, Fin] bf16
    w:        [H, Fin, C] f32
    att_src:  [H, 1, C] f32
    att_dst:  [H, 1, C] f32
    bias:     [H*C] if concat else [C]
    adj:      [N_pad, N_pad] int8 {0,1} mask (1 = edge j->i or self loop)
    """
    n_pad, fin = x_pad.shape
    H, _, C = w.shape
    hc = H * C
    assert C % 128 == 0, "per-head width must be 128-aligned"
    assert 2 * H <= 128
    assert n_pad % tm == 0

    # ---- host-side parameter prep (fold attention projections into the matmul) ----
    w_all = jnp.transpose(w, (1, 0, 2)).reshape(fin, hc)              # [Fin, H*C]
    wa_src = jnp.einsum("hfc,hc->fh", w, att_src[:, 0, :])            # [Fin, H]
    wa_dst = jnp.einsum("hfc,hc->fh", w, att_dst[:, 0, :])            # [Fin, H]
    wa = jnp.concatenate([wa_src, wa_dst], axis=1)                    # [Fin, 2H]
    wa = jnp.pad(wa, ((0, 0), (0, 128 - 2 * H)))                      # lane-dense block
    w_comb = jnp.concatenate([w_all, wa], axis=1).astype(jnp.bfloat16)  # [Fin, HC+128]

    # ---- kernel A: xw (bf16) + per-node attention logit terms (f32, lane-dense) ----
    xw, s = pl.pallas_call(
        functools.partial(_linear_kernel, hc=hc),
        out_shape=(jax.ShapeDtypeStruct((n_pad, hc), jnp.bfloat16),
                   jax.ShapeDtypeStruct((n_pad, 128), jnp.float32)),
        grid_spec=pltpu.PrefetchScalarGridSpec(
            num_scalar_prefetch=0,
            grid=(n_pad // tm,),
            in_specs=[
                pl.BlockSpec((tm, fin), lambda i: (i, 0)),            # x row tile
                pl.BlockSpec((fin, hc + 128), lambda i: (0, 0)),      # W_comb (resident)
            ],
            out_specs=[
                pl.BlockSpec((tm, hc), lambda i: (i, 0)),
                pl.BlockSpec((tm, 128), lambda i: (i, 0)),
            ]),
        compiler_params=pltpu.CompilerParams(
            dimension_semantics=("parallel",)),
    )(x_pad, w_comb)

    # Tiny host-side transpose so a_src is lane-dense along the source axis.
    a_src_t = jnp.transpose(s[:, :H], (1, 0))                          # [H, N_pad] f32

    # ---- kernel B: masked softmax + aggregation, all heads fused per row tile ----
    out = pl.pallas_call(
        functools.partial(_gat_attn_kernel, heads=H, c=C),
        out_shape=jax.ShapeDtypeStruct((n_pad, hc), jnp.float32),
        grid_spec=pltpu.PrefetchScalarGridSpec(
            num_scalar_prefetch=0,
            grid=(n_pad // tm,),
            in_specs=[
                pl.BlockSpec((n_pad, hc), lambda i: (0, 0)),          # xw (resident, all heads)
                pl.BlockSpec((tm, 128), lambda i: (i, 0)),            # s row tile (a_dst cols)
                pl.BlockSpec((H, n_pad), lambda i: (0, 0)),           # a_src rows (resident)
                pl.BlockSpec((tm, n_pad), lambda i: (i, 0)),          # int8 adjacency tile
            ],
            out_specs=pl.BlockSpec((tm, hc), lambda i: (i, 0))),      # lane-dense concat
        compiler_params=pltpu.CompilerParams(
            dimension_semantics=("parallel",),
            vmem_limit_bytes=64 * 1024 * 1024),
    )(xw, s, a_src_t, adj)                                            # [N_pad, H*C]

    if concat:
        return out + bias
    return jnp.mean(out.reshape(n_pad, H, C), axis=1) + bias


def gat_forward(params, x, edge_index, *, tm=256):
    """Full GAT.forward (eval mode: F.dropout is identity)."""
    # TODO(synk): training-mode dropout (p=0.6 on features and attention
    # coefficients) is not implemented; eval-mode forward is exact.
    N = x.shape[0]
    tm = max(32, _round_up(min(tm, N), 32))   # 32-aligned tiles (int8 adjacency rows)
    n_pad = _round_up(N, tm)

    x_pad = jnp.pad(x, ((0, n_pad - N), (0, 0))).astype(jnp.bfloat16)
    adj = build_adj_mask(edge_index, n_pad)

    h = gat_conv(x_pad, params["w1"], params["asrc1"], params["adst1"],
                 params["b1"], adj, concat=True, tm=tm)
    h = jnp.where(h > 0, h, jnp.expm1(h))                             # F.elu
    h = h.astype(jnp.bfloat16)
    y = gat_conv(h, params["w2"], params["asrc2"], params["adst2"],
                 params["b2"], adj, concat=False, tm=tm)
    return y[:N]


# ------------------------------- graph / param helpers -------------------------------
def build_adj_mask(edge_index, n_pad):
    """int8 {0,1} mask: 1 where edge j->i (or self loop), 0 otherwise."""
    src, dst = edge_index[0], edge_index[1]
    adj = jnp.zeros((n_pad, n_pad), jnp.float32)
    adj = adj.at[dst, src].set(1.0)                 # edge j -> i sits at adj[i, j]
    adj = jnp.maximum(adj, jnp.eye(n_pad, dtype=jnp.float32))   # self loops (all rows)
    return adj.astype(jnp.int8)


def build_adjacency(edge_index, num_nodes):
    src, dst = edge_index[0], edge_index[1]
    adj = jnp.zeros((num_nodes, num_nodes), jnp.float32)
    adj = adj.at[dst, src].set(1.0)
    return jnp.maximum(adj, jnp.eye(num_nodes, dtype=jnp.float32))


def init_params(key, in_ch, hid_ch, out_ch, heads):
    ks = jax.random.split(key, 8)
    g = lambda k, shape, fan_in: (jax.random.normal(k, shape, jnp.float32)
                                  / jnp.sqrt(jnp.float32(fan_in)))
    return {
        # conv1: GATConv(in_ch, hid_ch, heads=H, concat=True)
        "w1":    g(ks[0], (heads, in_ch, hid_ch), in_ch),
        "asrc1": g(ks[1], (heads, 1, hid_ch), hid_ch),
        "adst1": g(ks[2], (heads, 1, hid_ch), hid_ch),
        "b1":    g(ks[3], (heads * hid_ch,), hid_ch),
        # conv2: GATConv(heads*hid_ch, out_ch, heads=1, concat=False)
        "w2":    g(ks[4], (1, heads * hid_ch, out_ch), heads * hid_ch),
        "asrc2": g(ks[5], (1, 1, out_ch), out_ch),
        "adst2": g(ks[6], (1, 1, out_ch), out_ch),
        "b2":    g(ks[7], (out_ch,), out_ch),
    }


# ------------------- pure-JAX reference (mirrors kernel numerics) --------------------
def _gat_conv_ref(x, w, att_src, att_dst, bias, adj, *, concat):
    H, _, C = w.shape
    N = x.shape[0]
    xb = x.astype(jnp.bfloat16)
    xw = jnp.einsum("nf,hfc->hnc", xb, w.astype(jnp.bfloat16),
                    preferred_element_type=jnp.float32)            # [H, N, C]
    wa_s = jnp.einsum("hfc,hc->hf", w, att_src[:, 0, :]).astype(jnp.bfloat16)
    wa_d = jnp.einsum("hfc,hc->hf", w, att_dst[:, 0, :]).astype(jnp.bfloat16)
    a_src = jnp.einsum("nf,hf->hn", xb, wa_s, preferred_element_type=jnp.float32)
    a_dst = jnp.einsum("nf,hf->hn", xb, wa_d, preferred_element_type=jnp.float32)
    logits = a_dst[:, :, None] + a_src[:, None, :]                 # [H, N, N]
    logits = jnp.maximum(logits, 0.2 * logits)
    logits = jnp.where(adj[None] > 0, logits, -1e30)
    mx = jnp.max(logits, axis=-1, keepdims=True)
    e = jnp.exp(logits - mx)
    denom = jnp.sum(e, axis=-1, keepdims=True)
    o = jnp.einsum("hij,hjc->hic", e.astype(jnp.bfloat16),
                   xw.astype(jnp.bfloat16), preferred_element_type=jnp.float32)
    out = o / denom
    if concat:
        out = jnp.transpose(out, (1, 0, 2)).reshape(N, H * C)
    else:
        out = jnp.mean(out, axis=0)
    return out + bias


def _gat_forward_ref(params, x, adj):
    h = _gat_conv_ref(x, params["w1"], params["asrc1"], params["adst1"],
                      params["b1"], adj, concat=True)
    h = jnp.where(h > 0, h, jnp.expm1(h))
    return _gat_conv_ref(h, params["w2"], params["asrc2"], params["adst2"],
                         params["b2"], adj, concat=False)


if __name__ == "__main__":
    # Small shapes consistent with the module (channel widths kept at the
    # 128-lane default so per-head blocks stay lane-aligned; heads scaled down).
    N, IN_CH, HID_CH, OUT_CH, HEADS, NUM_EDGES = 80, 16, 128, 128, 2, 60
    TM = 32   # small row tile so the test exercises multiple row tiles + padding

    key = jax.random.PRNGKey(0)
    k_x, k_e1, k_e2, k_p = jax.random.split(key, 4)

    x = jax.random.normal(k_x, (N, IN_CH), jnp.float32)
    edge_index = jnp.stack([
        jax.random.randint(k_e1, (NUM_EDGES,), 0, N, jnp.int32),
        jax.random.randint(k_e2, (NUM_EDGES,), 0, N, jnp.int32),
    ])                                                   # [2, E] (src, dst)
    params = init_params(k_p, IN_CH, HID_CH, OUT_CH, HEADS)

    y = jax.block_until_ready(gat_forward(params, x, edge_index, tm=TM))

    adj_ref = build_adjacency(edge_index, N)
    y_ref = _gat_forward_ref(params, x, adj_ref)

    assert y.shape == (N, OUT_CH), y.shape
    assert jnp.all(jnp.isfinite(y))
    # bf16 MXU operands + approx reciprocal => slightly looser tolerance than f32.
    assert jnp.allclose(y, y_ref, atol=1e-2, rtol=1e-2), float(
        jnp.max(jnp.abs(y - y_ref)))
    print("KERNEL_OK")
</pallas_src>

<mosaic_0001>
module attributes {stable_mosaic.version = 11 : i64} {
  func.func @_linear_kernel(%arg0: i32, %arg1: memref<32x16xbf16, #tpu.memory_space<vmem>>, %arg2: memref<16x384xbf16, #tpu.memory_space<vmem>>, %arg3: memref<32x256xbf16, #tpu.memory_space<vmem>>, %arg4: memref<32x128xf32, #tpu.memory_space<vmem>>) attributes {dimension_semantics = [#tpu.dimension_semantics<parallel>], iteration_bounds = array<i64: 3>, scalar_prefetch = 0 : i64, scratch_operands = 0 : i64, tpu.core_type = #tpu.core_type<tc>, window_params = [{transform_indices = @transform_0, window_bounds = array<i64: 32, 16>}, {pipeline_mode = #tpu.pipeline_mode<synchronous>, transform_indices = @transform_1, window_bounds = array<i64: 16, 384>}, {transform_indices = @transform_2, window_bounds = array<i64: 32, 256>}, {transform_indices = @transform_3, window_bounds = array<i64: 32, 128>}]} {
    %c0 = arith.constant 0 : index
    %c0_0 = arith.constant 0 : index
    %0 = vector.load %arg1[%c0, %c0_0] : memref<32x16xbf16, #tpu.memory_space<vmem>>, vector<32x16xbf16>
    %c0_1 = arith.constant 0 : index
    %c0_2 = arith.constant 0 : index
    %1 = vector.load %arg2[%c0_1, %c0_2] : memref<16x384xbf16, #tpu.memory_space<vmem>>, vector<16x384xbf16>
    %cst = arith.constant dense<0.000000e+00> : vector<32x384xf32>
    %2 = tpu.matmul %0, %1, %cst {dimension_numbers = #tpu.dot_dimension_numbers<[1], [0], [0], [1], [0, 0, 1, 1], [], []>} : vector<32x16xbf16>, vector<16x384xbf16>, vector<32x384xf32> -> vector<32x384xf32>
    %3 = vector.extract_strided_slice %2 {offsets = [0, 0], sizes = [32, 256], strides = [1, 1]} : vector<32x384xf32> to vector<32x256xf32>
    %4 = arith.truncf %3 : vector<32x256xf32> to vector<32x256xbf16>
    %c0_3 = arith.constant 0 : index
    %c0_4 = arith.constant 0 : index
    %5 = vector.load %arg3[%c0_3, %c0_4] : memref<32x256xbf16, #tpu.memory_space<vmem>>, vector<32x256xbf16>
    tpu.vector_store %arg3[%c0_3, %c0_4], %4 {strides = array<i32>} : memref<32x256xbf16, #tpu.memory_space<vmem>>, vector<32x256xbf16>,
    %6 = vector.extract_strided_slice %2 {offsets = [0, 256], sizes = [32, 128], strides = [1, 1]} : vector<32x384xf32> to vector<32x128xf32>
    %c0_5 = arith.constant 0 : index
    %c0_6 = arith.constant 0 : index
    %7 = vector.load %arg4[%c0_5, %c0_6] : memref<32x128xf32, #tpu.memory_space<vmem>>, vector<32x128xf32>
    tpu.vector_store %arg4[%c0_5, %c0_6], %6 {strides = array<i32>} : memref<32x128xf32, #tpu.memory_space<vmem>>, vector<32x128xf32>,
    return
  }
  func.func @transform_0(%arg0: i32) -> (i32, i32) {
    %c0_i32 = arith.constant 0 : i32
    %c0_i32_0 = arith.constant 0 : i32
    return %arg0, %c0_i32 : i32, i32
  }
  func.func @transform_1(%arg0: i32) -> (i32, i32) {
    %c0_i32 = arith.constant 0 : i32
    %c0_i32_0 = arith.constant 0 : i32
    %c0_i32_1 = arith.constant 0 : i32
    return %c0_i32, %c0_i32_0 : i32, i32
  }
  func.func @transform_2(%arg0: i32) -> (i32, i32) {
    %c0_i32 = arith.constant 0 : i32
    %c0_i32_0 = arith.constant 0 : i32
    return %arg0, %c0_i32 : i32, i32
  }
  func.func @transform_3(%arg0: i32) -> (i32, i32) {
    %c0_i32 = arith.constant 0 : i32
    %c0_i32_0 = arith.constant 0 : i32
    return %arg0, %c0_i32 : i32, i32
  }
}

</mosaic_0001>

<llo_original>
// kernel: tpu_custom_call.1
$region0: #{tpu_custom_call.1}
  #allocation0 [shape = 'u32[]', space=smem, size = 0x4, offset = 0x4, fixed_abs, tag = 'smem constant byte address 0x4 - core index']
  #allocation1 [shape = 'u32[72,128]{1,0:T(1,128)}', space=vmem, size = 0x9000, scoped, tag = 'internal scratch']
  %s0 = inlined_call_operand.vmem [shape: bf16[96,16], index: 0, kind: input, shape index: {}]
  %s1 = inlined_call_operand.vmem [shape: bf16[16,384], index: 1, kind: input, shape index: {}]
  %s2 = inlined_call_operand.hbm [shape: bf16[96,256], index: 2, kind: output, shape index: {0}]
  %s3 = inlined_call_operand.hbm [shape: f32[96,128], index: 3, kind: output, shape index: {1}]
  %4 = xla_tuple %s2, %s3
  %s5 = sld [smem:[#allocation0]]
  $region49: #{tpu_custom_call.1} parent=0
    _
  %s7 = ssub.s32 1, %s5
  %s8 = scalar_select 0, %s7, %s5
  $region1: #{tpu_custom_call.1} parent=0
    #allocation2 [shape = 'u8[32768]{0}', space=vmem, size = 0x8000, scoped, tag = 'output window, operand 0']
    #allocation3 [shape = 's32[2]{0}', space=sflag, size = 0x8, scoped, tag = 'scoped memory for tpu_custom_call.1']
    #allocation4 [shape = 'u8[32768]{0}', space=vmem, size = 0x8000, scoped, tag = 'output window, operand 1']
    #allocation5 [shape = 's32[2]{0}', space=sflag, size = 0x8, scoped, tag = 'scoped memory for tpu_custom_call.1']
    %9 = vsyncpa [#allocation3], 0
    %s10 = scalar_lea.sflag [#allocation3], 1
    %11 = vsyncpa %s10, 0
    %12 = vsyncpa [#allocation5], 0
    %s13 = scalar_lea.sflag [#allocation5], 1
    %14 = vsyncpa %s13, 0
    loop: start=0, step=1, limit=5
    $region2: #{tpu_custom_call.1} parent=1 // loop_pre_header
      _
    $region3: #{tpu_custom_call.1} parent=1 // loop_header
      %s16 = sphi 0, %s20
      %p17 = scmp.ge.s32.totalorder %s16, 5
      %s26 = sphi 0, %s28
      %s29 = sphi 0, %s26
      %s30 = sphi 0, %s29
      %s46 = sphi 0, %s30
      %s50 = sphi 0, %s50
      %s52 = sphi 0, %s50
      %s53 = sphi 0, %s52
      %s67 = sphi 0, %s53
      %s73 = sphi 0, %s75
      %s76 = sphi 0, %s73
      %s77 = sphi 0, %s76
      %s93 = sphi 0, %s77
      %s99 = sphi 0, %s101
      %s102 = sphi 0, %s99
      %s103 = sphi 0, %s102
      %s119 = sphi 0, %s103
    $region4: #{tpu_custom_call.1} parent=1 // loop_header_branch
      %19 = sbr.rel (%p17) target = $region8
    $region5: #{tpu_custom_call.1} parent=1 // loop_body
      %s21 = ssub.s32 %s16, 1
      %s22 = ssub.s32 %s16, 2
      %s23 = sadd.s32 %s16, 1
      %s24 = ssub.s32 %s16, %s23
      %p25 = scmp.eq.s32.totalorder %s24, 0
      %s27 = sadd.s32 %s26, 1
      %s28 = scalar_select %p25, %s26, %s27
      %p31 = pneg %p25
      %p32 = scmp.eq.s32.totalorder %s16, 2
      %p33 = por %p31, %p32
      %p34 = scmp.ne.s32.totalorder %s26, %s29
      %p35 = scmp.eq.s32.totalorder %s16, 0
      %p36 = por %p34, %p35
      %p37 = scmp.ne.s32.totalorder %s26, %s29
      %p38 = scmp.eq.s32.totalorder %s21, 2
      %p39 = por %p37, %p38
      %p40 = scmp.ne.s32.totalorder %s29, %s30
      %p41 = scmp.eq.s32.totalorder %s21, 0
      %p42 = por %p40, %p41
      %p43 = scmp.ne.s32.totalorder %s29, %s30
      %p44 = scmp.eq.s32.totalorder %s22, 2
      %p45 = por %p43, %p44
      %p47 = scmp.ne.s32.totalorder %s30, %s46
      %p48 = scmp.eq.s32.totalorder %s22, 0
      %p49 = por %p47, %p48
      %s51 = sadd.s32 %s50, 1
      %p54 = scmp.eq.s32.totalorder %s16, 2
      %p55 = scmp.ne.s32.totalorder %s50, %s52
      %p56 = scmp.eq.s32.totalorder %s16, 0
      %p57 = por %p55, %p56
      %p58 = scmp.ne.s32.totalorder %s50, %s52
      %p59 = scmp.eq.s32.totalorder %s21, 2
      %p60 = por %p58, %p59
      %p61 = scmp.ne.s32.totalorder %s52, %s53
      %p62 = scmp.eq.s32.totalorder %s21, 0
      %p63 = por %p61, %p62
      %p64 = scmp.ne.s32.totalorder %s52, %s53
      %p65 = scmp.eq.s32.totalorder %s22, 2
      %p66 = por %p64, %p65
      %p68 = scmp.ne.s32.totalorder %s53, %s67
      %p69 = scmp.eq.s32.totalorder %s22, 0
      %p70 = por %p68, %p69
      %s71 = ssub.s32 %s16, %s23
      %p72 = scmp.eq.s32.totalorder %s71, 0
      %s74 = sadd.s32 %s73, 1
      %s75 = scalar_select %p72, %s73, %s74
      %p78 = pneg %p72
      %p79 = scmp.eq.s32.totalorder %s16, 2
      %p80 = por %p78, %p79
      %p81 = scmp.ne.s32.totalorder %s73, %s76
      %p82 = scmp.eq.s32.totalorder %s16, 0
      %p83 = por %p81, %p82
      %p84 = scmp.ne.s32.totalorder %s73, %s76
      %p85 = scmp.eq.s32.totalorder %s21, 2
      %p86 = por %p84, %p85
      %p87 = scmp.ne.s32.totalorder %s76, %s77
      %p88 = scmp.eq.s32.totalorder %s21, 0
      %p89 = por %p87, %p88
      %p90 = scmp.ne.s32.totalorder %s76, %s77
      %p91 = scmp.eq.s32.totalorder %s22, 2
      %p92 = por %p90, %p91
      %p94 = scmp.ne.s32.totalorder %s77, %s93
      %p95 = scmp.eq.s32.totalorder %s22, 0
      %p96 = por %p94, %p95
      %s97 = ssub.s32 %s16, %s23
      %p98 = scmp.eq.s32.totalorder %s97, 0
      %s100 = sadd.s32 %s99, 1
      %s101 = scalar_select %p98, %s99, %s100
      %p104 = pneg %p98
      %p105 = scmp.eq.s32.totalorder %s16, 2
      %p106 = por %p104, %p105
      %p107 = scmp.ne.s32.totalorder %s99, %s102
      %p108 = scmp.eq.s32.totalorder %s16, 0
      %p109 = por %p107, %p108
      %p110 = scmp.ne.s32.totalorder %s99, %s102
      %p111 = scmp.eq.s32.totalorder %s21, 2
      %p112 = por %p110, %p111
      %p113 = scmp.ne.s32.totalorder %s102, %s103
      %p114 = scmp.eq.s32.totalorder %s21, 0
      %p115 = por %p113, %p114
      %p116 = scmp.ne.s32.totalorder %s102, %s103
      %p117 = scmp.eq.s32.totalorder %s22, 2
      %p118 = por %p116, %p117
      %p120 = scmp.ne.s32.totalorder %s103, %s119
      %p121 = scmp.eq.s32.totalorder %s22, 0
      %p122 = por %p120, %p121
      %p123 = scmp.le.s32.totalorder 1, %s16
      %p124 = scmp.lt.s32.totalorder %s16, 4
      %p125 = pnand %p123, %p124
      %p126 = pneg %p125
      // Predicated region
      $region9: #{tpu_custom_call.1} parent=5 // pred_check
        _
      $region10: #{tpu_custom_call.1} parent=5 // pred_check_branch
        %128 = sbr.rel (%p125) target = $region12
      $region11: #{tpu_custom_call.1} parent=5 // pred_region
        %s129 = ssub.s32 %s16, 1
        // Predicated region
        $region13: #{tpu_custom_call.1} parent=11 // pred_check
          %p130 = pneg %p63
        $region14: #{tpu_custom_call.1} parent=11 // pred_check_branch
          %132 = sbr.rel (%p130) target = $region16
        $region15: #{tpu_custom_call.1} parent=11 // pred_region
          _
        $region16: #{tpu_custom_call.1} parent=11 // pred_fallthru
          _
      $region12: #{tpu_custom_call.1} parent=5 // pred_fallthru
        _
      %p133 = scmp.lt.s32.totalorder %s16, 3
      // Predicated region
      $region17: #{tpu_custom_call.1} parent=5 // pred_check
        %p134 = pneg %p133
      $region18: #{tpu_custom_call.1} parent=5 // pred_check_branch
        %136 = sbr.rel (%p134) target = $region20
      $region19: #{tpu_custom_call.1} parent=5 // pred_region
        // Predicated region
        $region21: #{tpu_custom_call.1} parent=19 // pred_check
          %p137 = pneg %p36
        $region22: #{tpu_custom_call.1} parent=19 // pred_check_branch
          %139 = sbr.rel (%p137) target = $region24
        $region23: #{tpu_custom_call.1} parent=19 // pred_region
          %s140 = smul.u32 4, %s16
          %p141 = scmp.lt.s32.totalorder %s140, 11
          %s142 = scalar_select %p141, %s140, 11
          %s143 = smul.addr %s142, 4
          %s144 = scalar_lea.vmem %s0, %s143
          %s145 = smul.u32 4, %s16
        $region24: #{tpu_custom_call.1} parent=19 // pred_fallthru
          _
      $region20: #{tpu_custom_call.1} parent=5 // pred_fallthru
        _
      %p146 = scmp.le.s32.totalorder 1, %s16
      %p147 = scmp.lt.s32.totalorder %s16, 4
      %p148 = pnand %p146, %p147
      %p149 = pneg %p148
      // Predicated region
      $region25: #{tpu_custom_call.1} parent=5 // pred_check
        _
      $region26: #{tpu_custom_call.1} parent=5 // pred_check_branch
        %151 = sbr.rel (%p148) target = $region28
      $region27: #{tpu_custom_call.1} parent=5 // pred_region
        %s152 = ssub.s32 %s16, 1
        %s153 = smul.u32 4, %s21
        %p154 = scmp.lt.s32.totalorder %s153, 11
        %s155 = scalar_select %p154, %s153, 11
        %s156 = smul.addr %s155, 4
        %s157 = scalar_lea.vmem %s0, %s156
        %p158 = pneg %p42
        %p159 = pneg %p39
        %p160 = pneg %p63
        %p161 = pneg %p60
        %p162 = pneg %p89
        %p163 = pneg %p86
        %s164 = sand.u32 %s76, 1
        %s165 = scalar_lea.sflag [#allocation3], %s164
        %s166 = sand.u32 %s76, 1
        %s167 = smul.addr %s166, 32
        %s168 = scalar_lea.vmem [#allocation2], %s167
        %p169 = pneg %p115
        %p170 = pneg %p112
        %s171 = sand.u32 %s102, 1
        %s172 = scalar_lea.sflag [#allocation5], %s171
        %s173 = sand.u32 %s102, 1
        %s174 = smul.addr %s173, 32
        %s175 = scalar_lea.vmem [#allocation4], %s174
        %s176 = smul.u32 4, %s21
        %p177 = scmp.lt.s32.totalorder %s176, 11
        %s178 = scalar_select %p177, %s176, 11
        %s179 = smul.addr %s178, 4
        %s180 = scalar_lea.vmem %s0, %s179
        %s181 = smul.u32 4, %s21
        %s182 = smul.u32 4, %s21
        %s183 = smul.u32 4, %s21
        %v185 = vld [vmem:[%s180] sm:$0xf]
        %v186 = vld [vmem:[%s180 + $0x4] sm:$0xf]
        %v187 = vld [vmem:[%s180 + $0x8] sm:$0xf]
        %v188 = vld [vmem:[%s180 + $0xc] sm:$0xf]
        %v189 = vld [vmem:[%s1] sm:$0xff]
        %v190 = vld [vmem:[%s1 + $0x8] sm:$0xf]
        %v191 = vld [vmem:[%s1 + $0xc] sm:$0xff]
        %v192 = vld [vmem:[%s1 + $0x14] sm:$0xf]
        %v197 = vunpack.c.l.b16 %v185
        %v198 = vunpack.c.l.b16 %v186
        %v199 = vunpack.c.l.b16 %v187
        %v200 = vunpack.c.l.b16 %v188
        %v201 = vpack.c.b16 %v198, %v197
        %v202 = vpack.c.b16 %v200, %v199
        %v207 = vunpack.c.l.b16 %v189
        %v208 = vunpack.c.h.b16 %v189
        %v209 = vunpack.c.l.b16 %v190
        %v210 = vunpack.c.l.b16 %v191
        %v211 = vunpack.c.h.b16 %v191
        %v212 = vunpack.c.l.b16 %v192
        %v213 = vpack.c.b16 %v210, %v207
        %v214 = vpack.c.b16 %v211, %v208
        %v215 = vpack.c.b16 %v212, %v209
        %vm219 = vcmask 130048
        %v221 = vsel %vm219, %v201, 0
        %v224 = vsel %vm219, %v202, 0
        %226 = vmatpush.bf16.msra.mxu0 0
        %227 = vmatpush.bf16.msra.mxu0 0
        %228 = vmatpush.bf16.msra.mxu0 0
        %229 = vmatpush.bf16.msra.mxu0 0
        %230 = vmatpush.bf16.msra.mxu0 0
        %231 = vmatpush.bf16.msra.mxu0 0
        %232 = vmatpush.bf16.msra.mxu0 0
        %233 = vmatpush.bf16.msra.mxu0 %v213
        %234 = vmatmul.bf16.gmra.mxu0 %v221
        %v235 = vpop.f32.mrf.mxu0
        %v236 = vadd.f32 0.0, %v235
        %v237 = vpop.f32.mrf.mxu0
        %v238 = vadd.f32 0.0, %v237
        %239 = vmatmul.bf16.gmra.mxu0 %v224
        %v240 = vpop.f32.mrf.mxu0
        %v241 = vadd.f32 0.0, %v240
        %v242 = vpop.f32.mrf.mxu0
        %v243 = vadd.f32 0.0, %v242
        %244 = vdwg.mxu0
        %245 = vmatpush.bf16.msra.mxu0 0
        %246 = vmatpush.bf16.msra.mxu0 0
        %247 = vmatpush.bf16.msra.mxu0 0
        %248 = vmatpush.bf16.msra.mxu0 0
        %249 = vmatpush.bf16.msra.mxu0 0
        %250 = vmatpush.bf16.msra.mxu0 0
        %251 = vmatpush.bf16.msra.mxu0 0
        %252 = vmatpush.bf16.msra.mxu0 %v214
        %253 = vmatmul.bf16.gmra.mxu0 %v221
        %v254 = vpop.f32.mrf.mxu0
        %v255 = vadd.f32 0.0, %v254
        %v256 = vpop.f32.mrf.mxu0
        %v257 = vadd.f32 0.0, %v256
        %258 = vmatmul.bf16.gmra.mxu0 %v224
        %v259 = vpop.f32.mrf.mxu0
        %v260 = vadd.f32 0.0, %v259
        %v261 = vpop.f32.mrf.mxu0
        %v262 = vadd.f32 0.0, %v261
        %263 = vdwg.mxu0
        %264 = vmatpush.bf16.msra.mxu0 0
        %265 = vmatpush.bf16.msra.mxu0 0
        %266 = vmatpush.bf16.msra.mxu0 0
        %267 = vmatpush.bf16.msra.mxu0 0
        %268 = vmatpush.bf16.msra.mxu0 0
        %269 = vmatpush.bf16.msra.mxu0 0
        %270 = vmatpush.bf16.msra.mxu0 0
        %271 = vmatpush.bf16.msra.mxu0 %v215
        %272 = vmatmul.bf16.gmra.mxu0 %v221
        %v273 = vpop.f32.mrf.mxu0
        %v274 = vadd.f32 0.0, %v273
        %v275 = vpop.f32.mrf.mxu0
        %v276 = vadd.f32 0.0, %v275
        %277 = vmatmul.bf16.gmra.mxu0 %v224
        %v278 = vpop.f32.mrf.mxu0
        %v279 = vadd.f32 0.0, %v278
        %v280 = vpop.f32.mrf.mxu0
        %v281 = vadd.f32 0.0, %v280
        %282 = vdwg.mxu0
        %v283 = vpack.c.bf16 %v255, %v236
        %v284 = vpack.c.bf16 %v257, %v238
        %v285 = vpack.c.bf16 %v260, %v241
        %v286 = vpack.c.bf16 %v262, %v243
        %287 = vst [vmem:[%s168] sm:$0xff] %v283
        %288 = vst [vmem:[%s168 + $0x8] sm:$0xff] %v284
        %289 = vst [vmem:[%s168 + $0x10] sm:$0xff] %v285
        %290 = vst [vmem:[%s168 + $0x18] sm:$0xff] %v286
        %291 = vst [vmem:[%s175] sm:$0xff] %v274
        %292 = vst [vmem:[%s175 + $0x8] sm:$0xff] %v276
        %293 = vst [vmem:[%s175 + $0x10] sm:$0xff] %v279
        %294 = vst [vmem:[%s175 + $0x18] sm:$0xff] %v281
        %s295 = sand.u32 %s76, 1
        %s296 = scalar_lea.sflag [#allocation3], %s295
        %s297 = sand.u32 %s76, 1
        %s298 = smul.addr %s297, 32
        %s299 = scalar_lea.vmem [#allocation2], %s298
        %s300 = sand.u32 %s102, 1
        %s301 = scalar_lea.sflag [#allocation5], %s300
        %s302 = sand.u32 %s102, 1
        %s303 = smul.addr %s302, 32
        %s304 = scalar_lea.vmem [#allocation4], %s303
        // Predicated region
        $region29: #{tpu_custom_call.1} parent=27 // pred_check
          %p305 = pneg %p86
        $region30: #{tpu_custom_call.1} parent=27 // pred_check_branch
          %307 = sbr.rel (%p305) target = $region32
        $region31: #{tpu_custom_call.1} parent=27 // pred_region
          %s308 = smul.u32 4, %s21
          %310 = vsyncadd %s296, 0
          %s311 = smul.addr %s308, 2
          %s312 = smul.addr %s311, 4
          %s313 = scalar_lea.hbm %s2, %s312
          %s314 = sshll.u32 %s299, 4
          %s315 = int_to_ptr.vmem [resolvable:$true] %s314
          %s316 = sshll.u32 %s313, 4
          %s317 = int_to_ptr.hbm [resolvable:$true] %s316
          %322 = dma.vmem_to_hbm [thread:$0]  %s315, 512, %s317, %s296, 128, 128, 8
        $region32: #{tpu_custom_call.1} parent=27 // pred_fallthru
          _
        // Predicated region
        $region33: #{tpu_custom_call.1} parent=27 // pred_check
          %p323 = pneg %p112
        $region34: #{tpu_custom_call.1} parent=27 // pred_check_branch
          %325 = sbr.rel (%p323) target = $region36
        $region35: #{tpu_custom_call.1} parent=27 // pred_region
          %s326 = smul.u32 4, %s21
          %328 = vsyncadd %s301, 0
          %s329 = smul.addr %s326, 8
          %s330 = scalar_lea.hbm %s3, %s329
          %s331 = sshll.u32 %s304, 4
          %s332 = int_to_ptr.vmem [resolvable:$true] %s331
          %s333 = sshll.u32 %s330, 4
          %s334 = int_to_ptr.hbm [resolvable:$true] %s333
          %339 = dma.vmem_to_hbm [thread:$0]  %s332, 512, %s334, %s301, 128, 128, 8
        $region36: #{tpu_custom_call.1} parent=27 // pred_fallthru
          _
      $region28: #{tpu_custom_call.1} parent=5 // pred_fallthru
        _
      %p340 = scmp.le.s32.totalorder 2, %s16
      // Predicated region
      $region37: #{tpu_custom_call.1} parent=5 // pred_check
        %p341 = pneg %p340
      $region38: #{tpu_custom_call.1} parent=5 // pred_check_branch
        %343 = sbr.rel (%p341) target = $region40
      $region39: #{tpu_custom_call.1} parent=5 // pred_region
        %s344 = ssub.s32 %s16, 2
        // Predicated region
        $region41: #{tpu_custom_call.1} parent=39 // pred_check
          %p345 = pneg %p92
        $region42: #{tpu_custom_call.1} parent=39 // pred_check_branch
          %347 = sbr.rel (%p345) target = $region44
        $region43: #{tpu_custom_call.1} parent=39 // pred_region
          %s348 = sand.u32 %s77, 1
          %s349 = scalar_lea.sflag [#allocation3], %s348
          %s350 = sand.u32 %s77, 1
          %s351 = smul.addr %s350, 32
          %s352 = scalar_lea.vmem [#allocation2], %s351
          %354 = dma.done %s349, 512
        $region44: #{tpu_custom_call.1} parent=39 // pred_fallthru
          _
        // Predicated region
        $region45: #{tpu_custom_call.1} parent=39 // pred_check
          %p355 = pneg %p118
        $region46: #{tpu_custom_call.1} parent=39 // pred_check_branch
          %357 = sbr.rel (%p355) target = $region48
        $region47: #{tpu_custom_call.1} parent=39 // pred_region
          %s358 = sand.u32 %s103, 1
          %s359 = scalar_lea.sflag [#allocation5], %s358
          %s360 = sand.u32 %s103, 1
          %s361 = smul.addr %s360, 32
          %s362 = scalar_lea.vmem [#allocation4], %s361
          %364 = dma.done %s359, 512
        $region48: #{tpu_custom_call.1} parent=39 // pred_fallthru
          _
      $region40: #{tpu_custom_call.1} parent=5 // pred_fallthru
        _
    $region6: #{tpu_custom_call.1} parent=1 // loop_footer
      %s20 = sadd.s32 1, %s16
    $region7: #{tpu_custom_call.1} parent=1 // loop_footer_branch
      %15 = sbr.rel target = $region3
    $region8: #{tpu_custom_call.1} parent=1 // loop_exit
      _
    %365 = vsyncpa [#allocation3], 1
    %s366 = scalar_lea.sflag [#allocation3], 1
    %367 = vsyncpa %s366, 1
    %368 = vsyncpa [#allocation5], 1
    %s369 = scalar_lea.sflag [#allocation5], 1
    %370 = vsyncpa %s369, 1

</llo_original>
